<compile_context>
chip_gen: v6e
topology: v6e:2x2x1
jax: 0.10.0
libtpu: 0.0.40
codegen_flags: <defaults>
</compile_context>

<pallas_src>
import jax
import jax.numpy as jnp
from jax.experimental import pallas as pl
from jax.experimental.pallas import tpu as pltpu


# --------------------------------------------------------------------------
# Kernel
# --------------------------------------------------------------------------
def _downsample_kernel(xc_ref, xb_ref, wc_ref, wb_ref, shc_ref, shb_ref,
                       oc_ref, ob_ref):
    # xc_ref / xb_ref : (Cin,  TM)   one spatial tile of one image, per pathway
    # wc_ref / wb_ref : (Cout, Cin)  BN-scale-folded 1x1 conv weights
    # shc_ref/ shb_ref: (Cout, 1)    folded BN shift
    # oc_ref / ob_ref : (Cout, TM)
    yc = jnp.dot(wc_ref[...], xc_ref[...], preferred_element_type=jnp.float32)
    oc_ref[...] = (yc + shc_ref[...]).astype(oc_ref.dtype)
    yb = jnp.dot(wb_ref[...], xb_ref[...], preferred_element_type=jnp.float32)
    ob_ref[...] = (yb + shb_ref[...]).astype(ob_ref.dtype)


def _pick_tm(m, cin, cout, *, in_itemsize=4, out_itemsize=4,
             budget_bytes=8 << 20):
    """Spatial (lane) tile: largest 128-multiple dividing M within a VMEM
    budget; falls back to the full dim (small M) or a capped, non-dividing
    tile (Pallas pads/masks the last block)."""
    per_lane = 2 * (cin * in_itemsize + cout * out_itemsize)  # both pathways
    cap = max(128, (budget_bytes // per_lane) // 128 * 128)
    for t in (8192, 4096, 2048, 1024, 512, 256, 128):
        if t <= cap and m % t == 0:
            return t
    if m <= cap:
        return m
    return cap


# --------------------------------------------------------------------------
# Wrapper
# --------------------------------------------------------------------------
def multi_channel_downsample(color_nchw, bright_nchw, color_params,
                             bright_params, *, stride=1):
    """Forward pass of MultiChannelDownsample.  NCHW in, NCHW out (f32).

    color_params / bright_params = (w (Cout,Cin), bn_scale (Cout,), bn_shift (Cout,))
    where bn_scale = gamma/sqrt(var+eps), bn_shift = beta - mean*bn_scale.
    """
    wc, sc_scale, sc_shift = color_params
    wb, sb_scale, sb_shift = bright_params
    assert bright_nchw.shape == color_nchw.shape

    if stride > 1:
        # TODO(synk): this materializes one subsampled copy in HBM; a strided
        # DMA (pl.ds(..., stride)) / Element-indexed row map would avoid it.
        color = color_nchw[:, :, ::stride, ::stride]
        bright = bright_nchw[:, :, ::stride, ::stride]
    else:
        color, bright = color_nchw, bright_nchw

    N, cin, Ho, Wo = color.shape
    M = Ho * Wo
    cout = wc.shape[0]

    # Contiguous reshapes (free): (N, Cin, Ho, Wo) -> (N, Cin, M)
    xc = color.reshape(N, cin, M).astype(jnp.float32)
    xb = bright.reshape(N, cin, M).astype(jnp.float32)

    # Fold BN scale into the conv weights; only the shift goes to the kernel.
    wcf = (wc * sc_scale[:, None]).astype(jnp.float32)         # (Cout, Cin)
    wbf = (wb * sb_scale[:, None]).astype(jnp.float32)
    shc = sc_shift.reshape(cout, 1).astype(jnp.float32)        # (Cout, 1)
    shb = sb_shift.reshape(cout, 1).astype(jnp.float32)

    TM = _pick_tm(M, cin, cout)
    grid = (N, pl.cdiv(M, TM))

    cost = pl.CostEstimate(
        flops=2 * 2 * N * M * cin * cout,
        transcendentals=0,
        bytes_accessed=2 * N * M * (cin + cout) * 4
                       + (wcf.size + wbf.size + shc.size + shb.size) * 4,
    )

    act_spec = pl.BlockSpec((None, cin, TM), lambda n, m: (n, 0, m))
    w_spec = pl.BlockSpec((cout, cin), lambda n, m: (0, 0))
    sh_spec = pl.BlockSpec((cout, 1), lambda n, m: (0, 0))
    out_spec = pl.BlockSpec((None, cout, TM), lambda n, m: (n, 0, m))

    oc, ob = pl.pallas_call(
        _downsample_kernel,
        out_shape=(jax.ShapeDtypeStruct((N, cout, M), jnp.float32),
                   jax.ShapeDtypeStruct((N, cout, M), jnp.float32)),
        grid_spec=pltpu.PrefetchScalarGridSpec(
            num_scalar_prefetch=0,
            grid=grid,
            in_specs=[act_spec, act_spec, w_spec, w_spec, sh_spec, sh_spec],
            out_specs=(out_spec, out_spec),
        ),
        compiler_params=pltpu.CompilerParams(
            dimension_semantics=("parallel", "parallel"),
            vmem_limit_bytes=32 * 1024 * 1024),
        cost_estimate=cost,
    )(xc, xb, wcf, wbf, shc, shb)

    return oc.reshape(N, cout, Ho, Wo), ob.reshape(N, cout, Ho, Wo)


# --------------------------------------------------------------------------
# Pure-JAX reference + parameter construction (BN folded to scale/shift)
# --------------------------------------------------------------------------
def _ref_pathway(x_nchw, w, scale, shift, stride):
    xs = x_nchw[:, :, ::stride, ::stride]
    y = jnp.einsum('oc,nchw->nohw', w, xs,
                   precision=jax.lax.Precision.HIGHEST)
    return y * scale[None, :, None, None] + shift[None, :, None, None]


def _make_pathway_params(key, cin, cout, eps=1e-5):
    k = jax.random.split(key, 5)
    w = 0.1 * jax.random.normal(k[0], (cout, cin), jnp.float32)     # (Cout,Cin)
    gamma = 1.0 + 0.1 * jax.random.normal(k[1], (cout,), jnp.float32)
    beta = 0.1 * jax.random.normal(k[2], (cout,), jnp.float32)
    mean = 0.1 * jax.random.normal(k[3], (cout,), jnp.float32)
    var = jax.nn.softplus(jax.random.normal(k[4], (cout,), jnp.float32))
    scale = gamma / jnp.sqrt(var + eps)
    shift = beta - mean * scale
    return w, scale, shift


# --------------------------------------------------------------------------
# Demo / correctness check
# --------------------------------------------------------------------------
if __name__ == "__main__":
    N, H, W = 2, 16, 16
    cin, cout = 16, 32

    key = jax.random.PRNGKey(0)
    k_xc, k_xb, k_pc, k_pb = jax.random.split(key, 4)

    color_x = jax.random.normal(k_xc, (N, cin, H, W), jnp.float32)
    bright_x = jax.random.normal(k_xb, (N, cin, H, W), jnp.float32)

    color_params = _make_pathway_params(k_pc, cin, cout)
    bright_params = _make_pathway_params(k_pb, cin, cout)

    ok = True
    for stride in (1, 2):
        c_out, b_out = multi_channel_downsample(
            color_x, bright_x, color_params, bright_params, stride=stride)
        jax.block_until_ready((c_out, b_out))

        c_ref = _ref_pathway(color_x, *color_params, stride)
        b_ref = _ref_pathway(bright_x, *bright_params, stride)

        Ho, Wo = H // stride, W // stride
        ok &= c_out.shape == (N, cout, Ho, Wo)
        ok &= b_out.shape == (N, cout, Ho, Wo)
        ok &= bool(jnp.allclose(c_out, c_ref, rtol=1e-4, atol=1e-4))
        ok &= bool(jnp.allclose(b_out, b_ref, rtol=1e-4, atol=1e-4))

    assert ok
    print("KERNEL_OK")
</pallas_src>

<mosaic_0001>
module attributes {stable_mosaic.version = 11 : i64} {
  func.func @_downsample_kernel(%arg0: i32, %arg1: i32, %arg2: memref<1x16x256xf32, #tpu.memory_space<vmem>>, %arg3: memref<1x16x256xf32, #tpu.memory_space<vmem>>, %arg4: memref<32x16xf32, #tpu.memory_space<vmem>>, %arg5: memref<32x16xf32, #tpu.memory_space<vmem>>, %arg6: memref<32x1xf32, #tpu.memory_space<vmem>>, %arg7: memref<32x1xf32, #tpu.memory_space<vmem>>, %arg8: memref<1x32x256xf32, #tpu.memory_space<vmem>>, %arg9: memref<1x32x256xf32, #tpu.memory_space<vmem>>) attributes {dimension_semantics = [#tpu.dimension_semantics<parallel>, #tpu.dimension_semantics<parallel>], iteration_bounds = array<i64: 2, 1>, scalar_prefetch = 0 : i64, scratch_operands = 0 : i64, tpu.core_type = #tpu.core_type<tc>, window_params = [{transform_indices = @transform_0, window_bounds = array<i64: 1, 16, 256>}, {transform_indices = @transform_1, window_bounds = array<i64: 1, 16, 256>}, {pipeline_mode = #tpu.pipeline_mode<synchronous>, transform_indices = @transform_2, window_bounds = array<i64: 32, 16>}, {pipeline_mode = #tpu.pipeline_mode<synchronous>, transform_indices = @transform_3, window_bounds = array<i64: 32, 16>}, {pipeline_mode = #tpu.pipeline_mode<synchronous>, transform_indices = @transform_4, window_bounds = array<i64: 32, 1>}, {pipeline_mode = #tpu.pipeline_mode<synchronous>, transform_indices = @transform_5, window_bounds = array<i64: 32, 1>}, {transform_indices = @transform_6, window_bounds = array<i64: 1, 32, 256>}, {transform_indices = @transform_7, window_bounds = array<i64: 1, 32, 256>}]} {
    %c0 = arith.constant 0 : index
    %c0_0 = arith.constant 0 : index
    %0 = vector.load %arg4[%c0, %c0_0] : memref<32x16xf32, #tpu.memory_space<vmem>>, vector<32x16xf32>
    %c0_1 = arith.constant 0 : index
    %c0_2 = arith.constant 0 : index
    %c0_3 = arith.constant 0 : index
    %1 = vector.load %arg2[%c0_1, %c0_2, %c0_3] : memref<1x16x256xf32, #tpu.memory_space<vmem>>, vector<1x16x256xf32>
    %2 = vector.shape_cast %1 : vector<1x16x256xf32> to vector<16x256xf32>
    %cst = arith.constant dense<0.000000e+00> : vector<32x256xf32>
    %3 = tpu.matmul %0, %2, %cst {dimension_numbers = #tpu.dot_dimension_numbers<[1], [0], [0], [1], [0, 0, 1, 1], [], []>} : vector<32x16xf32>, vector<16x256xf32>, vector<32x256xf32> -> vector<32x256xf32>
    %c0_4 = arith.constant 0 : index
    %c0_5 = arith.constant 0 : index
    %4 = vector.load %arg6[%c0_4, %c0_5] : memref<32x1xf32, #tpu.memory_space<vmem>>, vector<32x1xf32>
    %5 = vector.broadcast %4 : vector<32x1xf32> to vector<32x256xf32>
    %6 = arith.addf %3, %5 : vector<32x256xf32>
    %c0_6 = arith.constant 0 : index
    %c0_7 = arith.constant 0 : index
    %c0_8 = arith.constant 0 : index
    %7 = vector.load %arg8[%c0_6, %c0_7, %c0_8] : memref<1x32x256xf32, #tpu.memory_space<vmem>>, vector<1x32x256xf32>
    %8 = vector.shape_cast %7 : vector<1x32x256xf32> to vector<32x256xf32>
    %9 = vector.shape_cast %6 : vector<32x256xf32> to vector<1x32x256xf32>
    tpu.vector_store %arg8[%c0_6, %c0_7, %c0_8], %9 {strides = array<i32>} : memref<1x32x256xf32, #tpu.memory_space<vmem>>, vector<1x32x256xf32>,
    %c0_9 = arith.constant 0 : index
    %c0_10 = arith.constant 0 : index
    %10 = vector.load %arg5[%c0_9, %c0_10] : memref<32x16xf32, #tpu.memory_space<vmem>>, vector<32x16xf32>
    %c0_11 = arith.constant 0 : index
    %c0_12 = arith.constant 0 : index
    %c0_13 = arith.constant 0 : index
    %11 = vector.load %arg3[%c0_11, %c0_12, %c0_13] : memref<1x16x256xf32, #tpu.memory_space<vmem>>, vector<1x16x256xf32>
    %12 = vector.shape_cast %11 : vector<1x16x256xf32> to vector<16x256xf32>
    %cst_14 = arith.constant dense<0.000000e+00> : vector<32x256xf32>
    %13 = tpu.matmul %10, %12, %cst_14 {dimension_numbers = #tpu.dot_dimension_numbers<[1], [0], [0], [1], [0, 0, 1, 1], [], []>} : vector<32x16xf32>, vector<16x256xf32>, vector<32x256xf32> -> vector<32x256xf32>
    %c0_15 = arith.constant 0 : index
    %c0_16 = arith.constant 0 : index
    %14 = vector.load %arg7[%c0_15, %c0_16] : memref<32x1xf32, #tpu.memory_space<vmem>>, vector<32x1xf32>
    %15 = vector.broadcast %14 : vector<32x1xf32> to vector<32x256xf32>
    %16 = arith.addf %13, %15 : vector<32x256xf32>
    %c0_17 = arith.constant 0 : index
    %c0_18 = arith.constant 0 : index
    %c0_19 = arith.constant 0 : index
    %17 = vector.load %arg9[%c0_17, %c0_18, %c0_19] : memref<1x32x256xf32, #tpu.memory_space<vmem>>, vector<1x32x256xf32>
    %18 = vector.shape_cast %17 : vector<1x32x256xf32> to vector<32x256xf32>
    %19 = vector.shape_cast %16 : vector<32x256xf32> to vector<1x32x256xf32>
    tpu.vector_store %arg9[%c0_17, %c0_18, %c0_19], %19 {strides = array<i32>} : memref<1x32x256xf32, #tpu.memory_space<vmem>>, vector<1x32x256xf32>,
    return
  }
  func.func @transform_0(%arg0: i32, %arg1: i32) -> (i32, i32, i32) {
    %c0_i32 = arith.constant 0 : i32
    %c0_i32_0 = arith.constant 0 : i32
    return %arg0, %c0_i32, %arg1 : i32, i32, i32
  }
  func.func @transform_1(%arg0: i32, %arg1: i32) -> (i32, i32, i32) {
    %c0_i32 = arith.constant 0 : i32
    %c0_i32_0 = arith.constant 0 : i32
    return %arg0, %c0_i32, %arg1 : i32, i32, i32
  }
  func.func @transform_2(%arg0: i32, %arg1: i32) -> (i32, i32) {
    %c0_i32 = arith.constant 0 : i32
    %c0_i32_0 = arith.constant 0 : i32
    %c0_i32_1 = arith.constant 0 : i32
    return %c0_i32, %c0_i32_0 : i32, i32
  }
  func.func @transform_3(%arg0: i32, %arg1: i32) -> (i32, i32) {
    %c0_i32 = arith.constant 0 : i32
    %c0_i32_0 = arith.constant 0 : i32
    %c0_i32_1 = arith.constant 0 : i32
    return %c0_i32, %c0_i32_0 : i32, i32
  }
  func.func @transform_4(%arg0: i32, %arg1: i32) -> (i32, i32) {
    %c0_i32 = arith.constant 0 : i32
    %c0_i32_0 = arith.constant 0 : i32
    %c0_i32_1 = arith.constant 0 : i32
    return %c0_i32, %c0_i32_0 : i32, i32
  }
  func.func @transform_5(%arg0: i32, %arg1: i32) -> (i32, i32) {
    %c0_i32 = arith.constant 0 : i32
    %c0_i32_0 = arith.constant 0 : i32
    %c0_i32_1 = arith.constant 0 : i32
    return %c0_i32, %c0_i32_0 : i32, i32
  }
  func.func @transform_6(%arg0: i32, %arg1: i32) -> (i32, i32, i32) {
    %c0_i32 = arith.constant 0 : i32
    %c0_i32_0 = arith.constant 0 : i32
    return %arg0, %c0_i32, %arg1 : i32, i32, i32
  }
  func.func @transform_7(%arg0: i32, %arg1: i32) -> (i32, i32, i32) {
    %c0_i32 = arith.constant 0 : i32
    %c0_i32_0 = arith.constant 0 : i32
    return %arg0, %c0_i32, %arg1 : i32, i32, i32
  }
}

</mosaic_0001>

<llo_original>
// kernel: tpu_custom_call.1
$region0: #{tpu_custom_call.1}
  #allocation0 [shape = 'u32[]', space=smem, size = 0x4, offset = 0x4, fixed_abs, tag = 'smem constant byte address 0x4 - core index']
  #allocation1 [shape = 'u32[144,128]{1,0:T(1,128)}', space=vmem, size = 0x12000, scoped, tag = 'internal scratch']
  %s0 = inlined_call_operand.vmem [shape: f32[2,16,256], index: 0, kind: input, shape index: {}]
  %s1 = inlined_call_operand.vmem [shape: f32[2,16,256], index: 1, kind: input, shape index: {}]
  %s2 = inlined_call_operand.vmem [shape: f32[32,16], index: 2, kind: input, shape index: {}]
  %s3 = inlined_call_operand.vmem [shape: f32[32,16], index: 3, kind: input, shape index: {}]
  %s4 = inlined_call_operand.vmem [shape: f32[32,1], index: 4, kind: input, shape index: {}]
  %s5 = inlined_call_operand.vmem [shape: f32[32,1], index: 5, kind: input, shape index: {}]
  %s6 = inlined_call_operand.hbm [shape: f32[2,32,256], index: 6, kind: output, shape index: {0}]
  %s7 = inlined_call_operand.hbm [shape: f32[2,32,256], index: 7, kind: output, shape index: {1}]
  %8 = xla_tuple %s6, %s7
  %s9 = sld [smem:[#allocation0]]
  $region65: #{tpu_custom_call.1} parent=0
    _
  %s11 = ssub.s32 1, %s9
  %s12 = scalar_select 0, %s11, %s9
  $region1: #{tpu_custom_call.1} parent=0
    #allocation2 [shape = 'u8[65536]{0}', space=vmem, size = 0x10000, scoped, tag = 'output window, operand 0']
    #allocation3 [shape = 's32[2]{0}', space=sflag, size = 0x8, scoped, tag = 'scoped memory for tpu_custom_call.1']
    #allocation4 [shape = 'u8[65536]{0}', space=vmem, size = 0x10000, scoped, tag = 'output window, operand 1']
    #allocation5 [shape = 's32[2]{0}', space=sflag, size = 0x8, scoped, tag = 'scoped memory for tpu_custom_call.1']
    %13 = vsyncpa [#allocation3], 0
    %s14 = scalar_lea.sflag [#allocation3], 1
    %15 = vsyncpa %s14, 0
    %16 = vsyncpa [#allocation5], 0
    %s17 = scalar_lea.sflag [#allocation5], 1
    %18 = vsyncpa %s17, 0
    loop: start=0, step=1, limit=4
    $region2: #{tpu_custom_call.1} parent=1 // loop_pre_header
      _
    $region3: #{tpu_custom_call.1} parent=1 // loop_header
      %s20 = sphi 0, %s24
      %p21 = scmp.ge.s32.totalorder %s20, 4
      %s27 = sphi 0, %s39
      %s28 = sphi 0, %s35
      %s29 = sphi 0, %s27
      %s30 = sphi 0, %s28
      %s31 = sphi 0, %s29
      %s32 = sphi 0, %s30
      %s44 = sphi 0, %s46
      %s47 = sphi 0, %s44
      %s48 = sphi 0, %s47
      %s64 = sphi 0, %s48
      %s72 = sphi 0, %s74
      %s75 = sphi 0, %s72
      %s76 = sphi 0, %s75
      %s92 = sphi 0, %s76
      %s96 = sphi 0, %s96
      %s98 = sphi 0, %s96
      %s99 = sphi 0, %s98
      %s113 = sphi 0, %s99
      %s117 = sphi 0, %s117
      %s119 = sphi 0, %s117
      %s120 = sphi 0, %s119
      %s134 = sphi 0, %s120
      %s138 = sphi 0, %s138
      %s140 = sphi 0, %s138
      %s141 = sphi 0, %s140
      %s155 = sphi 0, %s141
      %s159 = sphi 0, %s159
      %s161 = sphi 0, %s159
      %s162 = sphi 0, %s161
      %s176 = sphi 0, %s162
      %s184 = sphi 0, %s186
      %s187 = sphi 0, %s184
      %s188 = sphi 0, %s187
      %s204 = sphi 0, %s188
      %s212 = sphi 0, %s214
      %s215 = sphi 0, %s212
      %s216 = sphi 0, %s215
      %s232 = sphi 0, %s216
    $region4: #{tpu_custom_call.1} parent=1 // loop_header_branch
      %23 = sbr.rel (%p21) target = $region8
    $region5: #{tpu_custom_call.1} parent=1 // loop_body
      %s25 = ssub.s32 %s20, 1
      %s26 = ssub.s32 %s20, 2
      %s33 = sadd.s32 1, %s28
      %p34 = scmp.ge.s32.totalorder %s33, 1
      %s35 = scalar_select %p34, 0, %s33
      %s36 = sadd.s32 1, %s27
      %s37 = scalar_select %p34, %s36, %s27
      %p38 = scmp.ge.s32.totalorder %s37, 2
      %s39 = scalar_select %p38, 0, %s37
      %s40 = ssub.s32 %s27, %s39
      %s41 = ssub.s32 %s28, %s35
      %s42 = sor.u32 %s40, %s41
      %p43 = scmp.eq.s32.totalorder %s42, 0
      %s45 = sadd.s32 %s44, 1
      %s46 = scalar_select %p43, %s44, %s45
      %p49 = pneg %p43
      %p50 = scmp.eq.s32.totalorder %s20, 1
      %p51 = por %p49, %p50
      %p52 = scmp.ne.s32.totalorder %s44, %s47
      %p53 = scmp.eq.s32.totalorder %s20, 0
      %p54 = por %p52, %p53
      %p55 = scmp.ne.s32.totalorder %s44, %s47
      %p56 = scmp.eq.s32.totalorder %s25, 1
      %p57 = por %p55, %p56
      %p58 = scmp.ne.s32.totalorder %s47, %s48
      %p59 = scmp.eq.s32.totalorder %s25, 0
      %p60 = por %p58, %p59
      %p61 = scmp.ne.s32.totalorder %s47, %s48
      %p62 = scmp.eq.s32.totalorder %s26, 1
      %p63 = por %p61, %p62
      %p65 = scmp.ne.s32.totalorder %s48, %s64
      %p66 = scmp.eq.s32.totalorder %s26, 0
      %p67 = por %p65, %p66
      %s68 = ssub.s32 %s27, %s39
      %s69 = ssub.s32 %s28, %s35
      %s70 = sor.u32 %s68, %s69
      %p71 = scmp.eq.s32.totalorder %s70, 0
      %s73 = sadd.s32 %s72, 1
      %s74 = scalar_select %p71, %s72, %s73
      %p77 = pneg %p71
      %p78 = scmp.eq.s32.totalorder %s20, 1
      %p79 = por %p77, %p78
      %p80 = scmp.ne.s32.totalorder %s72, %s75
      %p81 = scmp.eq.s32.totalorder %s20, 0
      %p82 = por %p80, %p81
      %p83 = scmp.ne.s32.totalorder %s72, %s75
      %p84 = scmp.eq.s32.totalorder %s25, 1
      %p85 = por %p83, %p84
      %p86 = scmp.ne.s32.totalorder %s75, %s76
      %p87 = scmp.eq.s32.totalorder %s25, 0
      %p88 = por %p86, %p87
      %p89 = scmp.ne.s32.totalorder %s75, %s76
      %p90 = scmp.eq.s32.totalorder %s26, 1
      %p91 = por %p89, %p90
      %p93 = scmp.ne.s32.totalorder %s76, %s92
      %p94 = scmp.eq.s32.totalorder %s26, 0
      %p95 = por %p93, %p94
      %s97 = sadd.s32 %s96, 1
      %p100 = scmp.eq.s32.totalorder %s20, 1
      %p101 = scmp.ne.s32.totalorder %s96, %s98
      %p102 = scmp.eq.s32.totalorder %s20, 0
      %p103 = por %p101, %p102
      %p104 = scmp.ne.s32.totalorder %s96, %s98
      %p105 = scmp.eq.s32.totalorder %s25, 1
      %p106 = por %p104, %p105
      %p107 = scmp.ne.s32.totalorder %s98, %s99
      %p108 = scmp.eq.s32.totalorder %s25, 0
      %p109 = por %p107, %p108
      %p110 = scmp.ne.s32.totalorder %s98, %s99
      %p111 = scmp.eq.s32.totalorder %s26, 1
      %p112 = por %p110, %p111
      %p114 = scmp.ne.s32.totalorder %s99, %s113
      %p115 = scmp.eq.s32.totalorder %s26, 0
      %p116 = por %p114, %p115
      %s118 = sadd.s32 %s117, 1
      %p121 = scmp.eq.s32.totalorder %s20, 1
      %p122 = scmp.ne.s32.totalorder %s117, %s119
      %p123 = scmp.eq.s32.totalorder %s20, 0
      %p124 = por %p122, %p123
      %p125 = scmp.ne.s32.totalorder %s117, %s119
      %p126 = scmp.eq.s32.totalorder %s25, 1
      %p127 = por %p125, %p126
      %p128 = scmp.ne.s32.totalorder %s119, %s120
      %p129 = scmp.eq.s32.totalorder %s25, 0
      %p130 = por %p128, %p129
      %p131 = scmp.ne.s32.totalorder %s119, %s120
      %p132 = scmp.eq.s32.totalorder %s26, 1
      %p133 = por %p131, %p132
      %p135 = scmp.ne.s32.totalorder %s120, %s134
      %p136 = scmp.eq.s32.totalorder %s26, 0
      %p137 = por %p135, %p136
      %s139 = sadd.s32 %s138, 1
      %p142 = scmp.eq.s32.totalorder %s20, 1
      %p143 = scmp.ne.s32.totalorder %s138, %s140
      %p144 = scmp.eq.s32.totalorder %s20, 0
      %p145 = por %p143, %p144
      %p146 = scmp.ne.s32.totalorder %s138, %s140
      %p147 = scmp.eq.s32.totalorder %s25, 1
      %p148 = por %p146, %p147
      %p149 = scmp.ne.s32.totalorder %s140, %s141
      %p150 = scmp.eq.s32.totalorder %s25, 0
      %p151 = por %p149, %p150
      %p152 = scmp.ne.s32.totalorder %s140, %s141
      %p153 = scmp.eq.s32.totalorder %s26, 1
      %p154 = por %p152, %p153
      %p156 = scmp.ne.s32.totalorder %s141, %s155
      %p157 = scmp.eq.s32.totalorder %s26, 0
      %p158 = por %p156, %p157
      %s160 = sadd.s32 %s159, 1
      %p163 = scmp.eq.s32.totalorder %s20, 1
      %p164 = scmp.ne.s32.totalorder %s159, %s161
      %p165 = scmp.eq.s32.totalorder %s20, 0
      %p166 = por %p164, %p165
      %p167 = scmp.ne.s32.totalorder %s159, %s161
      %p168 = scmp.eq.s32.totalorder %s25, 1
      %p169 = por %p167, %p168
      %p170 = scmp.ne.s32.totalorder %s161, %s162
      %p171 = scmp.eq.s32.totalorder %s25, 0
      %p172 = por %p170, %p171
      %p173 = scmp.ne.s32.totalorder %s161, %s162
      %p174 = scmp.eq.s32.totalorder %s26, 1
      %p175 = por %p173, %p174
      %p177 = scmp.ne.s32.totalorder %s162, %s176
      %p178 = scmp.eq.s32.totalorder %s26, 0
      %p179 = por %p177, %p178
      %s180 = ssub.s32 %s27, %s39
      %s181 = ssub.s32 %s28, %s35
      %s182 = sor.u32 %s180, %s181
      %p183 = scmp.eq.s32.totalorder %s182, 0
      %s185 = sadd.s32 %s184, 1
      %s186 = scalar_select %p183, %s184, %s185
      %p189 = pneg %p183
      %p190 = scmp.eq.s32.totalorder %s20, 1
      %p191 = por %p189, %p190
      %p192 = scmp.ne.s32.totalorder %s184, %s187
      %p193 = scmp.eq.s32.totalorder %s20, 0
      %p194 = por %p192, %p193
      %p195 = scmp.ne.s32.totalorder %s184, %s187
      %p196 = scmp.eq.s32.totalorder %s25, 1
      %p197 = por %p195, %p196
      %p198 = scmp.ne.s32.totalorder %s187, %s188
      %p199 = scmp.eq.s32.totalorder %s25, 0
      %p200 = por %p198, %p199
      %p201 = scmp.ne.s32.totalorder %s187, %s188
      %p202 = scmp.eq.s32.totalorder %s26, 1
      %p203 = por %p201, %p202
      %p205 = scmp.ne.s32.totalorder %s188, %s204
      %p206 = scmp.eq.s32.totalorder %s26, 0
      %p207 = por %p205, %p206
      %s208 = ssub.s32 %s27, %s39
      %s209 = ssub.s32 %s28, %s35
      %s210 = sor.u32 %s208, %s209
      %p211 = scmp.eq.s32.totalorder %s210, 0
      %s213 = sadd.s32 %s212, 1
      %s214 = scalar_select %p211, %s212, %s213
      %p217 = pneg %p211
      %p218 = scmp.eq.s32.totalorder %s20, 1
      %p219 = por %p217, %p218
      %p220 = scmp.ne.s32.totalorder %s212, %s215
      %p221 = scmp.eq.s32.totalorder %s20, 0
      %p222 = por %p220, %p221
      %p223 = scmp.ne.s32.totalorder %s212, %s215
      %p224 = scmp.eq.s32.totalorder %s25, 1
      %p225 = por %p223, %p224
      %p226 = scmp.ne.s32.totalorder %s215, %s216
      %p227 = scmp.eq.s32.totalorder %s25, 0
      %p228 = por %p226, %p227
      %p229 = scmp.ne.s32.totalorder %s215, %s216
      %p230 = scmp.eq.s32.totalorder %s26, 1
      %p231 = por %p229, %p230
      %p233 = scmp.ne.s32.totalorder %s216, %s232
      %p234 = scmp.eq.s32.totalorder %s26, 0
      %p235 = por %p233, %p234
      %p236 = scmp.le.s32.totalorder 1, %s20
      %p237 = scmp.lt.s32.totalorder %s20, 3
      %p238 = pnand %p236, %p237
      %p239 = pneg %p238
      // Predicated region
      $region9: #{tpu_custom_call.1} parent=5 // pred_check
        _
      $region10: #{tpu_custom_call.1} parent=5 // pred_check_branch
        %241 = sbr.rel (%p238) target = $region12
      $region11: #{tpu_custom_call.1} parent=5 // pred_region
        %s242 = ssub.s32 %s20, 1
        // Predicated region
        $region13: #{tpu_custom_call.1} parent=11 // pred_check
          %p243 = pneg %p109
        $region14: #{tpu_custom_call.1} parent=11 // pred_check_branch
          %245 = sbr.rel (%p243) target = $region16
        $region15: #{tpu_custom_call.1} parent=11 // pred_region
          _
        $region16: #{tpu_custom_call.1} parent=11 // pred_fallthru
          _
        // Predicated region
        $region17: #{tpu_custom_call.1} parent=11 // pred_check
          %p246 = pneg %p130
        $region18: #{tpu_custom_call.1} parent=11 // pred_check_branch
          %248 = sbr.rel (%p246) target = $region20
        $region19: #{tpu_custom_call.1} parent=11 // pred_region
          _
        $region20: #{tpu_custom_call.1} parent=11 // pred_fallthru
          _
        // Predicated region
        $region21: #{tpu_custom_call.1} parent=11 // pred_check
          %p249 = pneg %p151
        $region22: #{tpu_custom_call.1} parent=11 // pred_check_branch
          %251 = sbr.rel (%p249) target = $region24
        $region23: #{tpu_custom_call.1} parent=11 // pred_region
          _
        $region24: #{tpu_custom_call.1} parent=11 // pred_fallthru
          _
        // Predicated region
        $region25: #{tpu_custom_call.1} parent=11 // pred_check
          %p252 = pneg %p172
        $region26: #{tpu_custom_call.1} parent=11 // pred_check_branch
          %254 = sbr.rel (%p252) target = $region28
        $region27: #{tpu_custom_call.1} parent=11 // pred_region
          _
        $region28: #{tpu_custom_call.1} parent=11 // pred_fallthru
          _
      $region12: #{tpu_custom_call.1} parent=5 // pred_fallthru
        _
      %p255 = scmp.lt.s32.totalorder %s20, 2
      // Predicated region
      $region29: #{tpu_custom_call.1} parent=5 // pred_check
        %p256 = pneg %p255
      $region30: #{tpu_custom_call.1} parent=5 // pred_check_branch
        %258 = sbr.rel (%p256) target = $region32
      $region31: #{tpu_custom_call.1} parent=5 // pred_region
        // Predicated region
        $region33: #{tpu_custom_call.1} parent=31 // pred_check
          %p259 = pneg %p54
        $region34: #{tpu_custom_call.1} parent=31 // pred_check_branch
          %261 = sbr.rel (%p259) target = $region36
        $region35: #{tpu_custom_call.1} parent=31 // pred_region
          %s262 = smul.u32 2, %s28
          %p263 = scmp.lt.s32.totalorder %s27, 1
          %s264 = scalar_select %p263, %s27, 1
          %p265 = scmp.lt.s32.totalorder %s262, 1
          %s266 = scalar_select %p265, %s262, 1
          %s267 = smul.addr %s264, 4
          %s268 = sadd.s32 %s266, %s267
          %s269 = smul.addr %s268, 8
          %s270 = scalar_lea.vmem %s0, %s269
          %s271 = smul.u32 2, %s28
        $region36: #{tpu_custom_call.1} parent=31 // pred_fallthru
          _
        // Predicated region
        $region37: #{tpu_custom_call.1} parent=31 // pred_check
          %p272 = pneg %p82
        $region38: #{tpu_custom_call.1} parent=31 // pred_check_branch
          %274 = sbr.rel (%p272) target = $region40
        $region39: #{tpu_custom_call.1} parent=31 // pred_region
          %s275 = smul.u32 2, %s28
          %p276 = scmp.lt.s32.totalorder %s27, 1
          %s277 = scalar_select %p276, %s27, 1
          %p278 = scmp.lt.s32.totalorder %s275, 1
          %s279 = scalar_select %p278, %s275, 1
          %s280 = smul.addr %s277, 4
          %s281 = sadd.s32 %s279, %s280
          %s282 = smul.addr %s281, 8
          %s283 = scalar_lea.vmem %s1, %s282
          %s284 = smul.u32 2, %s28
        $region40: #{tpu_custom_call.1} parent=31 // pred_fallthru
          _
      $region32: #{tpu_custom_call.1} parent=5 // pred_fallthru
        _
      %p285 = scmp.le.s32.totalorder 1, %s20
      %p286 = scmp.lt.s32.totalorder %s20, 3
      %p287 = pnand %p285, %p286
      %p288 = pneg %p287
      // Predicated region
      $region41: #{tpu_custom_call.1} parent=5 // pred_check
        _
      $region42: #{tpu_custom_call.1} parent=5 // pred_check_branch
        %290 = sbr.rel (%p287) target = $region44
      $region43: #{tpu_custom_call.1} parent=5 // pred_region
        %s291 = ssub.s32 %s20, 1
        %s292 = smul.u32 2, %s30
        %p293 = scmp.lt.s32.totalorder %s29, 1
        %s294 = scalar_select %p293, %s29, 1
        %p295 = scmp.lt.s32.totalorder %s292, 1
        %s296 = scalar_select %p295, %s292, 1
        %s297 = smul.addr %s294, 4
        %s298 = sadd.s32 %s296, %s297
        %s299 = smul.addr %s298, 8
        %s300 = scalar_lea.vmem %s0, %s299
        %p301 = pneg %p60
        %p302 = pneg %p57
        %s303 = smul.u32 2, %s30
        %p304 = scmp.lt.s32.totalorder %s29, 1
        %s305 = scalar_select %p304, %s29, 1
        %p306 = scmp.lt.s32.totalorder %s303, 1
        %s307 = scalar_select %p306, %s303, 1
        %s308 = smul.addr %s305, 4
        %s309 = sadd.s32 %s307, %s308
        %s310 = smul.addr %s309, 8
        %s311 = scalar_lea.vmem %s1, %s310
        %p312 = pneg %p88
        %p313 = pneg %p85
        %p314 = pneg %p109
        %p315 = pneg %p106
        %p316 = pneg %p130
        %p317 = pneg %p127
        %p318 = pneg %p151
        %p319 = pneg %p148
        %p320 = pneg %p172
        %p321 = pneg %p169
        %p322 = pneg %p200
        %p323 = pneg %p197
        %s324 = sand.u32 %s187, 1
        %s325 = scalar_lea.sflag [#allocation3], %s324
        %s326 = sand.u32 %s187, 1
        %s327 = smul.addr %s326, 64
        %s328 = scalar_lea.vmem [#allocation2], %s327
        %p329 = pneg %p228
        %p330 = pneg %p225
        %s331 = sand.u32 %s215, 1
        %s332 = scalar_lea.sflag [#allocation5], %s331
        %s333 = sand.u32 %s215, 1
        %s334 = smul.addr %s333, 64
        %s335 = scalar_lea.vmem [#allocation4], %s334
        %s336 = smul.u32 2, %s30
        %p337 = scmp.lt.s32.totalorder %s29, 1
        %s338 = scalar_select %p337, %s29, 1
        %p339 = scmp.lt.s32.totalorder %s336, 1
        %s340 = scalar_select %p339, %s336, 1
        %s341 = smul.addr %s338, 4
        %s342 = sadd.s32 %s340, %s341
        %s343 = smul.addr %s342, 8
        %s344 = scalar_lea.vmem %s0, %s343
        %s345 = smul.u32 2, %s30
        %s346 = smul.u32 2, %s30
        %p347 = scmp.lt.s32.totalorder %s29, 1
        %s348 = scalar_select %p347, %s29, 1
        %p349 = scmp.lt.s32.totalorder %s346, 1
        %s350 = scalar_select %p349, %s346, 1
        %s351 = smul.addr %s348, 4
        %s352 = sadd.s32 %s350, %s351
        %s353 = smul.addr %s352, 8
        %s354 = scalar_lea.vmem %s1, %s353
        %s355 = smul.u32 2, %s30
        %s356 = smul.u32 2, %s30
        %s357 = smul.u32 2, %s30
        %v358 = vld [vmem:[%s2] sm:$0xff]
        %v359 = vld [vmem:[%s2 + $0x8] sm:$0xff]
        %v360 = vld [vmem:[%s2 + $0x10] sm:$0xff]
        %v361 = vld [vmem:[%s2 + $0x18] sm:$0xff]
        %v362 = vld [vmem:[%s344] sm:$0xff]
        %v363 = vld [vmem:[%s344 + $0x8] sm:$0xff]
        %v364 = vld [vmem:[%s344 + $0x10] sm:$0xff]
        %v365 = vld [vmem:[%s344 + $0x18] sm:$0xff]
        %v366 = vld [vmem:[%s4] sm:$0xff]
        %v367 = vld [vmem:[%s4 + $0x8] sm:$0xff]
        %v368 = vld [vmem:[%s4 + $0x10] sm:$0xff]
        %v369 = vld [vmem:[%s4 + $0x18] sm:$0xff]
        %371 = vset.pattern.permute.xlu0 0
        %372 = vperm.xlu0 %371, %v366
        %v373 = vpop.permute.xlu0 %372
        %376 = vset.pattern.permute.xlu0 0
        %377 = vperm.xlu0 %376, %v367
        %v378 = vpop.permute.xlu0 %377
        %381 = vset.pattern.permute.xlu0 0
        %382 = vperm.xlu0 %381, %v368
        %v383 = vpop.permute.xlu0 %382
        %386 = vset.pattern.permute.xlu0 0
        %387 = vperm.xlu0 %386, %v369
        %v388 = vpop.permute.xlu0 %387
        %vm390 = vcmask 130048
        %v392 = vsel %vm390, %v358, 0
        %v395 = vsel %vm390, %v359, 0
        %v398 = vsel %vm390, %v360, 0
        %v401 = vsel %vm390, %v361, 0
        %403 = vmatprep.subr.mxu0 0.0
        %404 = vmatpush1.msra.mxu0 0.0
        %405 = vmatprep.subr.mxu0 0.0
        %406 = vmatpush1.msra.mxu0 0.0
        %407 = vmatprep.subr.mxu0 0.0
        %408 = vmatpush1.msra.mxu0 0.0
        %409 = vmatprep.subr.mxu0 0.0
        %410 = vmatpush1.msra.mxu0 0.0
        %411 = vmatprep.subr.mxu0 0.0
        %412 = vmatpush1.msra.mxu0 0.0
        %413 = vmatprep.subr.mxu0 0.0
        %414 = vmatpush1.msra.mxu0 0.0
        %415 = vmatprep.subr.mxu0 0.0
        %416 = vmatpush1.msra.mxu0 0.0
        %417 = vmatprep.subr.mxu0 0.0
        %418 = vmatpush1.msra.mxu0 0.0
        %419 = vmatprep.subr.mxu0 0.0
        %420 = vmatpush1.msra.mxu0 0.0
        %421 = vmatprep.subr.mxu0 0.0
        %422 = vmatpush1.msra.mxu0 0.0
        %423 = vmatprep.subr.mxu0 0.0
        %424 = vmatpush1.msra.mxu0 0.0
        %425 = vmatprep.subr.mxu0 0.0
        %426 = vmatpush1.msra.mxu0 0.0
        %427 = vmatprep.subr.mxu0 0.0
        %428 = vmatpush1.msra.mxu0 0.0
        %429 = vmatprep.subr.mxu0 0.0
        %430 = vmatpush1.msra.mxu0 0.0
        %431 = vmatprep.subr.mxu0 %v365
        %432 = vmatpush1.msra.mxu0 %v364
        %433 = vmatprep.subr.mxu0 %v363
        %434 = vmatpush1.msra.mxu0 %v362
        %435 = vmatprep.subr.mxu0 0.0
        %436 = vmatpush2.msra.mxu0 0.0
        %437 = vmatprep.subr.mxu0 0.0
        %438 = vmatpush2.msra.mxu0 0.0
        %439 = vmatprep.subr.mxu0 0.0
        %440 = vmatpush2.msra.mxu0 0.0
        %441 = vmatprep.subr.mxu0 0.0
        %442 = vmatpush2.msra.mxu0 0.0
        %443 = vmatprep.subr.mxu0 0.0
        %444 = vmatpush2.msra.mxu0 0.0
        %445 = vmatprep.subr.mxu0 0.0
        %446 = vmatpush2.msra.mxu0 0.0
        %447 = vmatprep.subr.mxu0 0.0
        %448 = vmatpush2.msra.mxu0 0.0
        %449 = vmatprep.subr.mxu0 0.0
        %450 = vmatpush2.msra.mxu0 0.0
        %451 = vmatprep.subr.mxu0 0.0
        %452 = vmatpush2.msra.mxu0 0.0
        %453 = vmatprep.subr.mxu0 0.0
        %454 = vmatpush2.msra.mxu0 0.0
        %455 = vmatprep.subr.mxu0 0.0
        %456 = vmatpush2.msra.mxu0 0.0
        %457 = vmatprep.subr.mxu0 0.0
        %458 = vmatpush2.msra.mxu0 0.0
        %459 = vmatprep.subr.mxu0 0.0
        %460 = vmatpush2.msra.mxu0 0.0
        %461 = vmatprep.subr.mxu0 0.0
        %462 = vmatpush2.msra.mxu0 0.0
        %463 = vmatprep.subr.mxu0 0.0
        %464 = vmatpush2.msra.mxu0 0.0
        %465 = vmatprep.subr.mxu0 0.0
        %466 = vmatpush2.msra.mxu0 0.0
        %467 = vmatprep.mubr.f32.mxu0 0.0
        %468 = vmatmul.mubr.f32.gmra.mxu0 %v392
        %v469 = vpop.f32.mrf.mxu0
        %v470 = vadd.f32 %v373, %v469
        %v471 = vpop.f32.mrf.mxu0
        %v472 = vadd.f32 %v373, %v471
        %473 = vmatprep.mubr.f32.mxu0 0.0
        %474 = vmatmul.mubr.f32.gmra.mxu0 %v395
        %v475 = vpop.f32.mrf.mxu0
        %v476 = vadd.f32 %v378, %v475
        %v477 = vpop.f32.mrf.mxu0
        %v478 = vadd.f32 %v378, %v477
        %479 = vmatprep.mubr.f32.mxu0 0.0
        %480 = vmatmul.mubr.f32.gmra.mxu0 %v398
        %v481 = vpop.f32.mrf.mxu0
        %v482 = vadd.f32 %v383, %v481
        %v483 = vpop.f32.mrf.mxu0
        %v484 = vadd.f32 %v383, %v483
        %485 = vmatprep.mubr.f32.mxu0 0.0
        %486 = vmatmul.mubr.f32.gmra.mxu0 %v401
        %v487 = vpop.f32.mrf.mxu0
        %v488 = vadd.f32 %v388, %v487
        %v489 = vpop.f32.mrf.mxu0
        %v490 = vadd.f32 %v388, %v489
        %491 = vdwg.mxu0
        %492 = vst [vmem:[%s328] sm:$0xff] %v470
        %493 = vst [vmem:[%s328 + $0x8] sm:$0xff] %v472
        %494 = vst [vmem:[%s328 + $0x10] sm:$0xff] %v476
        %495 = vst [vmem:[%s328 + $0x18] sm:$0xff] %v478
        %496 = vst [vmem:[%s328 + $0x20] sm:$0xff] %v482
        %497 = vst [vmem:[%s328 + $0x28] sm:$0xff] %v484
        %498 = vst [vmem:[%s328 + $0x30] sm:$0xff] %v488
        %499 = vst [vmem:[%s328 + $0x38] sm:$0xff] %v490
        %v500 = vld [vmem:[%s3] sm:$0xff]
        %v501 = vld [vmem:[%s3 + $0x8] sm:$0xff]
        %v502 = vld [vmem:[%s3 + $0x10] sm:$0xff]
        %v503 = vld [vmem:[%s3 + $0x18] sm:$0xff]
        %v504 = vld [vmem:[%s354] sm:$0xff]
        %v505 = vld [vmem:[%s354 + $0x8] sm:$0xff]
        %v506 = vld [vmem:[%s354 + $0x10] sm:$0xff]
        %v507 = vld [vmem:[%s354 + $0x18] sm:$0xff]
        %v508 = vld [vmem:[%s5] sm:$0xff]
        %v509 = vld [vmem:[%s5 + $0x8] sm:$0xff]
        %v510 = vld [vmem:[%s5 + $0x10] sm:$0xff]
        %v511 = vld [vmem:[%s5 + $0x18] sm:$0xff]
        %513 = vset.pattern.permute.xlu0 0
        %514 = vperm.xlu0 %513, %v508
        %v515 = vpop.permute.xlu0 %514
        %518 = vset.pattern.permute.xlu0 0
        %519 = vperm.xlu0 %518, %v509
        %v520 = vpop.permute.xlu0 %519
        %523 = vset.pattern.permute.xlu0 0
        %524 = vperm.xlu0 %523, %v510
        %v525 = vpop.permute.xlu0 %524
        %528 = vset.pattern.permute.xlu0 0
        %529 = vperm.xlu0 %528, %v511
        %v530 = vpop.permute.xlu0 %529
        %v533 = vsel %vm390, %v500, 0
        %v536 = vsel %vm390, %v501, 0
        %v539 = vsel %vm390, %v502, 0
        %v542 = vsel %vm390, %v503, 0
        %544 = vmatprep.subr.mxu0 0.0
        %545 = vmatpush1.msra.mxu0 0.0
        %546 = vmatprep.subr.mxu0 0.0
        %547 = vmatpush1.msra.mxu0 0.0
        %548 = vmatprep.subr.mxu0 0.0
        %549 = vmatpush1.msra.mxu0 0.0
        %550 = vmatprep.subr.mxu0 0.0
        %551 = vmatpush1.msra.mxu0 0.0
        %552 = vmatprep.subr.mxu0 0.0
        %553 = vmatpush1.msra.mxu0 0.0
        %554 = vmatprep.subr.mxu0 0.0
        %555 = vmatpush1.msra.mxu0 0.0
        %556 = vmatprep.subr.mxu0 0.0
        %557 = vmatpush1.msra.mxu0 0.0
        %558 = vmatprep.subr.mxu0 0.0
        %559 = vmatpush1.msra.mxu0 0.0
        %560 = vmatprep.subr.mxu0 0.0
        %561 = vmatpush1.msra.mxu0 0.0
        %562 = vmatprep.subr.mxu0 0.0
        %563 = vmatpush1.msra.mxu0 0.0
        %564 = vmatprep.subr.mxu0 0.0
        %565 = vmatpush1.msra.mxu0 0.0
        %566 = vmatprep.subr.mxu0 0.0
        %567 = vmatpush1.msra.mxu0 0.0
        %568 = vmatprep.subr.mxu0 0.0
        %569 = vmatpush1.msra.mxu0 0.0
        %570 = vmatprep.subr.mxu0 0.0
        %571 = vmatpush1.msra.mxu0 0.0
        %572 = vmatprep.subr.mxu0 %v507
        %573 = vmatpush1.msra.mxu0 %v506
        %574 = vmatprep.subr.mxu0 %v505
        %575 = vmatpush1.msra.mxu0 %v504
        %576 = vmatprep.subr.mxu0 0.0
        %577 = vmatpush2.msra.mxu0 0.0
        %578 = vmatprep.subr.mxu0 0.0
        %579 = vmatpush2.msra.mxu0 0.0
        %580 = vmatprep.subr.mxu0 0.0
        %581 = vmatpush2.msra.mxu0 0.0
        %582 = vmatprep.subr.mxu0 0.0
        %583 = vmatpush2.msra.mxu0 0.0
        %584 = vmatprep.subr.mxu0 0.0
        %585 = vmatpush2.msra.mxu0 0.0
        %586 = vmatprep.subr.mxu0 0.0
        %587 = vmatpush2.msra.mxu0 0.0
        %588 = vmatprep.subr.mxu0 0.0
        %589 = vmatpush2.msra.mxu0 0.0
        %590 = vmatprep.subr.mxu0 0.0
        %591 = vmatpush2.msra.mxu0 0.0
        %592 = vmatprep.subr.mxu0 0.0
        %593 = vmatpush2.msra.mxu0 0.0
        %594 = vmatprep.subr.mxu0 0.0
        %595 = vmatpush2.msra.mxu0 0.0
        %596 = vmatprep.subr.mxu0 0.0
        %597 = vmatpush2.msra.mxu0 0.0
        %598 = vmatprep.subr.mxu0 0.0
        %599 = vmatpush2.msra.mxu0 0.0
        %600 = vmatprep.subr.mxu0 0.0
        %601 = vmatpush2.msra.mxu0 0.0
        %602 = vmatprep.subr.mxu0 0.0
        %603 = vmatpush2.msra.mxu0 0.0
        %604 = vmatprep.subr.mxu0 0.0
        %605 = vmatpush2.msra.mxu0 0.0
        %606 = vmatprep.subr.mxu0 0.0
        %607 = vmatpush2.msra.mxu0 0.0
        %608 = vmatprep.mubr.f32.mxu0 0.0
        %609 = vmatmul.mubr.f32.gmra.mxu0 %v533
        %v610 = vpop.f32.mrf.mxu0
        %v611 = vadd.f32 %v515, %v610
        %v612 = vpop.f32.mrf.mxu0
        %v613 = vadd.f32 %v515, %v612
        %614 = vmatprep.mubr.f32.mxu0 0.0
        %615 = vmatmul.mubr.f32.gmra.mxu0 %v536
        %v616 = vpop.f32.mrf.mxu0
        %v617 = vadd.f32 %v520, %v616
        %v618 = vpop.f32.mrf.mxu0
        %v619 = vadd.f32 %v520, %v618
        %620 = vmatprep.mubr.f32.mxu0 0.0
        %621 = vmatmul.mubr.f32.gmra.mxu0 %v539
        %v622 = vpop.f32.mrf.mxu0
        %v623 = vadd.f32 %v525, %v622
        %v624 = vpop.f32.mrf.mxu0
        %v625 = vadd.f32 %v525, %v624
        %626 = vmatprep.mubr.f32.mxu0 0.0
        %627 = vmatmul.mubr.f32.gmra.mxu0 %v542
        %v628 = vpop.f32.mrf.mxu0
        %v629 = vadd.f32 %v530, %v628
        %v630 = vpop.f32.mrf.mxu0
        %v631 = vadd.f32 %v530, %v630
        %632 = vdwg.mxu0
        %633 = vst [vmem:[%s335] sm:$0xff] %v611
        %634 = vst [vmem:[%s335 + $0x8] sm:$0xff] %v613
        %635 = vst [vmem:[%s335 + $0x10] sm:$0xff] %v617
        %636 = vst [vmem:[%s335 + $0x18] sm:$0xff] %v619
        %637 = vst [vmem:[%s335 + $0x20] sm:$0xff] %v623
        %638 = vst [vmem:[%s335 + $0x28] sm:$0xff] %v625
        %639 = vst [vmem:[%s335 + $0x30] sm:$0xff] %v629
        %640 = vst [vmem:[%s335 + $0x38] sm:$0xff] %v631
        %s641 = sand.u32 %s187, 1
        %s642 = scalar_lea.sflag [#allocation3], %s641
        %s643 = sand.u32 %s187, 1
        %s644 = smul.addr %s643, 64
        %s645 = scalar_lea.vmem [#allocation2], %s644
        %s646 = sand.u32 %s215, 1
        %s647 = scalar_lea.sflag [#allocation5], %s646
        %s648 = sand.u32 %s215, 1
        %s649 = smul.addr %s648, 64
        %s650 = scalar_lea.vmem [#allocation4], %s649
        // Predicated region
        $region45: #{tpu_custom_call.1} parent=43 // pred_check
          %p651 = pneg %p197
        $region46: #{tpu_custom_call.1} parent=43 // pred_check_branch
          %653 = sbr.rel (%p651) target = $region48
        $region47: #{tpu_custom_call.1} parent=43 // pred_region
          %s654 = smul.u32 2, %s30
          %s656 = ssub.s32 1024, 1024
          %657 = vsyncadd %s642, %s656
          %s658 = smul.addr %s29, 8
          %s659 = sadd.s32 %s654, %s658
          %s660 = smul.addr %s659, 128
          %s661 = scalar_lea.hbm %s6, %s660
          %s662 = sshll.u32 %s645, 4
          %s663 = int_to_ptr.vmem [resolvable:$true] %s662
          %668 = dma.vmem_to_hbm [thread:$0]  %s663, 1024, %s661, %s642, 256, 256, 16
        $region48: #{tpu_custom_call.1} parent=43 // pred_fallthru
          _
        // Predicated region
        $region49: #{tpu_custom_call.1} parent=43 // pred_check
          %p669 = pneg %p225
        $region50: #{tpu_custom_call.1} parent=43 // pred_check_branch
          %671 = sbr.rel (%p669) target = $region52
        $region51: #{tpu_custom_call.1} parent=43 // pred_region
          %s672 = smul.u32 2, %s30
          %s674 = ssub.s32 1024, 1024
          %675 = vsyncadd %s647, %s674
          %s676 = smul.addr %s29, 8
          %s677 = sadd.s32 %s672, %s676
          %s678 = smul.addr %s677, 128
          %s679 = scalar_lea.hbm %s7, %s678
          %s680 = sshll.u32 %s650, 4
          %s681 = int_to_ptr.vmem [resolvable:$true] %s680
          %686 = dma.vmem_to_hbm [thread:$0]  %s681, 1024, %s679, %s647, 256, 256, 16
        $region52: #{tpu_custom_call.1} parent=43 // pred_fallthru
          _
      $region44: #{tpu_custom_call.1} parent=5 // pred_fallthru
        _
      %p687 = scmp.le.s32.totalorder 2, %s20
      // Predicated region
      $region53: #{tpu_custom_call.1} parent=5 // pred_check
        %p688 = pneg %p687
      $region54: #{tpu_custom_call.1} parent=5 // pred_check_branch
        %690 = sbr.rel (%p688) target = $region56
      $region55: #{tpu_custom_call.1} parent=5 // pred_region
        %s691 = ssub.s32 %s20, 2
        // Predicated region
        $region57: #{tpu_custom_call.1} parent=55 // pred_check
          %p692 = pneg %p203
        $region58: #{tpu_custom_call.1} parent=55 // pred_check_branch
          %694 = sbr.rel (%p692) target = $region60
        $region59: #{tpu_custom_call.1} parent=55 // pred_region
          %s695 = sand.u32 %s188, 1
          %s696 = scalar_lea.sflag [#allocation3], %s695
          %s697 = sand.u32 %s188, 1
          %s698 = smul.addr %s697, 64
          %s699 = scalar_lea.vmem [#allocation2], %s698
          %700 = dma.done %s696, 1024
        $region60: #{tpu_custom_call.1} parent=55 // pred_fallthru
          _
        // Predicated region
        $region61: #{tpu_custom_call.1} parent=55 // pred_check
          %p701 = pneg %p231
        $region62: #{tpu_custom_call.1} parent=55 // pred_check_branch
          %703 = sbr.rel (%p701) target = $region64
        $region63: #{tpu_custom_call.1} parent=55 // pred_region
          %s704 = sand.u32 %s216, 1
          %s705 = scalar_lea.sflag [#allocation5], %s704
          %s706 = sand.u32 %s216, 1
          %s707 = smul.addr %s706, 64
          %s708 = scalar_lea.vmem [#allocation4], %s707
          %709 = dma.done %s705, 1024
        $region64: #{tpu_custom_call.1} parent=55 // pred_fallthru
          _
      $region56: #{tpu_custom_call.1} parent=5 // pred_fallthru
        _
    $region6: #{tpu_custom_call.1} parent=1 // loop_footer
      %s24 = sadd.s32 1, %s20
    $region7: #{tpu_custom_call.1} parent=1 // loop_footer_branch
      %19 = sbr.rel target = $region3
    $region8: #{tpu_custom_call.1} parent=1 // loop_exit
      _
    %710 = vsyncpa [#allocation3], 1
    %s711 = scalar_lea.sflag [#allocation3], 1
    %712 = vsyncpa %s711, 1
    %713 = vsyncpa [#allocation5], 1
    %s714 = scalar_lea.sflag [#allocation5], 1
    %715 = vsyncpa %s714, 1

</llo_original>
